<compile_context>
chip_gen: v7x
topology: tpu7x:2x2x1
jax: 0.10.0
libtpu: 0.0.40
codegen_flags: <defaults>
</compile_context>

<pallas_src>
import numpy as np
import jax
import jax.numpy as jnp
from jax.experimental import pallas as pl
from jax.experimental.pallas import tpu as pltpu  # noqa: F401

# Small, module-consistent shapes
N = 16          # args.N        (number of graph nodes)
D_X = 8         # args.d_x      (input feature dim)
D_H = 32        # args.d_h == h_dim
T = 4           # number of time steps (len(eis))
N_SUPPORT = 6   # args.nb_spectral_supports (6 edge-weight channels used)
E = 48          # edges per time step

# Row offsets inside the packed constant slab (all slices start on a multiple
# of 8 sublanes).
_Y0, _Y1 = 0, N_SUPPORT * N            # Y          rows   0.. 96
_WP0, _WP1 = _Y1, _Y1 + D_H            # wproj1     rows  96..128
_WL0, _WL1 = _WP1, _WP1 + D_H          # wlin       rows 128..160
_B0, _B1 = _WL1, _WL1 + N              # base       rows 160..176
_F0, _F1 = _B1, _B1 + N                # feat_ctrb  rows 176..192
_BL0, _BL1 = _F1, _F1 + 1              # blin       row  192


def dspgnn_kernel(acat_ref, const_ref, out_ref):
    """Gridless: whole problem resident in VMEM; all T steps in 3 matmuls."""
    a = acat_ref[...]                                       # (T*N, 6N) bf16

    y = const_ref[_Y0:_Y1, :].astype(jnp.bfloat16)          # (6N, d_h)
    wproj1 = const_ref[_WP0:_WP1, :]                        # (d_h, d_h)
    wlin = const_ref[_WL0:_WL1, :]                          # (d_h, d_h)
    base = const_ref[_B0:_B1, :]                            # (N, d_h)
    feat_ctrb = const_ref[_F0:_F1, :]                       # (N, d_h)
    blin = const_ref[_BL0:_BL1, :]                          # (1, d_h)

    # Cheap VPU broadcast of the per-node constants across the T time steps.
    base64 = jnp.tile(base, (T, 1))                         # (T*N, d_h)
    fc64 = jnp.tile(feat_ctrb, (T, 1))                      # (T*N, d_h)

    # relu(sage_combine_projection(cat(feat, agg1..agg6)))  -- folded form,
    # all T steps at once.
    proj = jnp.maximum(
        base64 + jnp.dot(a, y, preferred_element_type=jnp.float32), 0.0)
    # proj_linear(cat(feat, proj))  (dropout = identity)
    h = fc64 + jnp.dot(proj, wproj1, preferred_element_type=jnp.float32)
    # F.normalize(p=2, dim=1) via EUP rsqrt (args.norma == True)
    ssq = jnp.sum(h * h, axis=1, keepdims=True)
    h = h * jax.lax.rsqrt(jnp.maximum(ssq, 1e-24))
    # DspGNN: torch.tanh(embeds) -> Recurrent(lstm=False) == final Linear
    z = jnp.dot(jnp.tanh(h), wlin, preferred_element_type=jnp.float32) + blin

    out_ref[...] = z.astype(out_ref.dtype)                  # single store


def dspgnn_forward(x, A, wrel, brel, wroot, wfeat, bfeat,
                   wcomb, bcomb, wproj, bproj, wlin, blin):
    # --- wrapper-side (one-time) weight folding: fold wcomb, the proj_linear
    #     feat path and every bias of those stages into per-support / base /
    #     feat_ctrb constants. All of these are time-invariant. ---
    wrelp = jnp.einsum('kxh,khg->kxg', wrel, wcomb[1:])              # (6, d_x, d_h)
    wbase = wfeat @ wcomb[0] + jnp.einsum('kxh,khg->xg', wroot, wcomb[1:])
    bbase = bcomb + bfeat @ wcomb[0] + jnp.einsum('kih,khg->ig', brel, wcomb[1:])

    base = x @ wbase + bbase                                          # (N, d_h)
    feat_ctrb = x @ (wfeat @ wproj[0]) + (bfeat @ wproj[0] + bproj)   # (N, d_h)
    # Y[k*N + m] = x[m] @ (wrel_k @ wcomb[k+1])   -> (6N, d_h)
    Y = jnp.einsum('nx,kxg->kng', x, wrelp).reshape(N_SUPPORT * N, D_H)

    # Stacked mean-aggregation layout: row t*N+n, column k*N+m = A[t,k,n,m].
    acat = jnp.transpose(A, (0, 2, 1, 3)).reshape(
        T * N, N_SUPPORT * N).astype(jnp.bfloat16)                    # (64, 96)

    # Pack the surviving constants into one f32 slab (single DMA).
    const = jnp.concatenate(
        [Y, wproj[1], wlin, base, feat_ctrb, blin], axis=0)           # (193, 32)

    out_flat = pl.pallas_call(
        dspgnn_kernel,
        out_shape=jax.ShapeDtypeStruct((T * N, D_H), jnp.float32),    # (64, 32)
    )(acat, const)

    # (T*N, d_h) -> (T, N, d_h), matching torch.stack(embeds) -> rnn(...)
    return out_flat.reshape(T, N, D_H)


def build_dense_aggr(src, dst, ew):
    """Dense mean-aggregation matrices A[t, k] from (src, dst, edge_weight)."""
    A = jnp.zeros((T, N_SUPPORT, N, N), jnp.float32)
    for t in range(T):
        deg = jnp.zeros((N,), jnp.float32).at[dst[t]].add(1.0)
        deg = jnp.maximum(deg, 1.0)                       # isolated targets -> 0 agg
        for k in range(N_SUPPORT):
            a = jnp.zeros((N, N), jnp.float32).at[dst[t], src[t]].add(ew[t, k])
            A = A.at[t, k].set(a / deg[:, None])
    return A


def reference(x, A, wrel, brel, wroot, wfeat, bfeat, wcomb, bcomb, wproj, bproj,
              wlin, blin):
    """Pure-JAX reference of the same forward, with explicit concatenations
    (matches the PyTorch module's un-folded computation)."""
    wcomb_flat = wcomb.reshape(7 * D_H, D_H)
    wproj_flat = wproj.reshape(2 * D_H, D_H)
    outs = []
    for t in range(T):
        feat = x @ wfeat + bfeat
        parts = [feat]
        for k in range(N_SUPPORT):
            agg = A[t, k] @ x
            parts.append(agg @ wrel[k] + brel[k] + x @ wroot[k])
        cat7 = jnp.concatenate(parts, axis=1)
        proj = jax.nn.relu(cat7 @ wcomb_flat + bcomb)
        cat2 = jnp.concatenate([feat, proj], axis=1)
        h = cat2 @ wproj_flat + bproj
        h = h / jnp.maximum(jnp.linalg.norm(h, axis=1, keepdims=True), 1e-12)
        outs.append(jnp.tanh(h) @ wlin + blin)
    return jnp.stack(outs)


if __name__ == "__main__":
    key = jax.random.PRNGKey(0)
    ks = jax.random.split(key, 16)

    # Node features (static across time, as in DspGNN.forward: x = xs)
    x = jax.random.normal(ks[0], (N, D_X), jnp.float32)

    # 5 distinct GraphConv weight sets; support 6 reuses conv5 (as in the module)
    wrel5 = jax.random.normal(ks[1], (5, D_X, D_H), jnp.float32) * 0.2
    brel5 = jax.random.normal(ks[2], (5, 1, D_H), jnp.float32) * 0.05
    wroot5 = jax.random.normal(ks[3], (5, D_X, D_H), jnp.float32) * 0.2
    wrel = jnp.concatenate([wrel5, wrel5[4:5]], axis=0)     # (6, d_x, d_h)
    brel = jnp.concatenate([brel5, brel5[4:5]], axis=0)     # (6, 1, d_h)
    wroot = jnp.concatenate([wroot5, wroot5[4:5]], axis=0)  # (6, d_x, d_h)

    wfeat = jax.random.normal(ks[4], (D_X, D_H), jnp.float32) * 0.2   # feat_proj.W^T
    bfeat = jax.random.normal(ks[5], (1, D_H), jnp.float32) * 0.05
    wcomb = jax.random.normal(ks[6], (7, D_H, D_H), jnp.float32) * 0.1  # combine.W^T chunks
    bcomb = jax.random.normal(ks[7], (1, D_H), jnp.float32) * 0.05
    wproj = jax.random.normal(ks[8], (2, D_H, D_H), jnp.float32) * 0.1  # proj_linear.W^T chunks
    bproj = jax.random.normal(ks[9], (1, D_H), jnp.float32) * 0.05
    wlin = jax.random.normal(ks[10], (D_H, D_H), jnp.float32) * 0.1     # Recurrent.lin.W^T
    blin = jax.random.normal(ks[11], (1, D_H), jnp.float32) * 0.05

    # Graph snapshots: eis[t] = (src, dst), ews[t] = (6, E) edge weights
    src = jax.random.randint(ks[12], (T, E), 0, N)
    dst = jax.random.randint(ks[13], (T, E), 0, N)
    ew = jax.random.uniform(ks[14], (T, N_SUPPORT, E), jnp.float32,
                            minval=0.1, maxval=1.0)
    A = build_dense_aggr(src, dst, ew)   # (T, 6, N, N) dense mean-aggregation

    out = dspgnn_forward(x, A, wrel, brel, wroot, wfeat, bfeat,
                         wcomb, bcomb, wproj, bproj, wlin, blin)
    out = jax.block_until_ready(out)

    ref = reference(x, A, wrel, brel, wroot, wfeat, bfeat,
                    wcomb, bcomb, wproj, bproj, wlin, blin)
    np.testing.assert_allclose(np.asarray(out), np.asarray(ref),
                               rtol=1e-2, atol=1e-2)

    assert out.shape == (T, N, D_H)
    print("KERNEL_OK")
</pallas_src>

<mosaic_0001>
module attributes {stable_mosaic.version = 11 : i64} {
  func.func @dspgnn_kernel(%arg0: memref<64x96xbf16, #tpu.memory_space<vmem>>, %arg1: memref<193x32xf32, #tpu.memory_space<vmem>>, %arg2: memref<64x32xf32, #tpu.memory_space<vmem>>) attributes {dimension_semantics = [], scalar_prefetch = 0 : i64, scratch_operands = 0 : i64, tpu.core_type = #tpu.core_type<tc>} {
    %c0 = arith.constant 0 : index
    %c0_0 = arith.constant 0 : index
    %0 = vector.load %arg0[%c0, %c0_0] : memref<64x96xbf16, #tpu.memory_space<vmem>>, vector<64x96xbf16>
    %c0_1 = arith.constant 0 : index
    %c0_2 = arith.constant 0 : index
    %1 = vector.load %arg1[%c0_1, %c0_2] : memref<193x32xf32, #tpu.memory_space<vmem>>, vector<96x32xf32>
    %2 = arith.truncf %1 : vector<96x32xf32> to vector<96x32xbf16>
    %c96 = arith.constant 96 : index
    %c0_3 = arith.constant 0 : index
    %3 = vector.load %arg1[%c96, %c0_3] : memref<193x32xf32, #tpu.memory_space<vmem>>, vector<32x32xf32>
    %c128 = arith.constant 128 : index
    %c0_4 = arith.constant 0 : index
    %4 = vector.load %arg1[%c128, %c0_4] : memref<193x32xf32, #tpu.memory_space<vmem>>, vector<32x32xf32>
    %c160 = arith.constant 160 : index
    %c0_5 = arith.constant 0 : index
    %5 = vector.load %arg1[%c160, %c0_5] : memref<193x32xf32, #tpu.memory_space<vmem>>, vector<16x32xf32>
    %c176 = arith.constant 176 : index
    %c0_6 = arith.constant 0 : index
    %6 = vector.load %arg1[%c176, %c0_6] : memref<193x32xf32, #tpu.memory_space<vmem>>, vector<16x32xf32>
    %c192 = arith.constant 192 : index
    %c0_7 = arith.constant 0 : index
    %7 = vector.load %arg1[%c192, %c0_7] : memref<193x32xf32, #tpu.memory_space<vmem>>, vector<1x32xf32>
    %8 = tpu.concatenate %5, %5, %5, %5 in 0 : vector<16x32xf32>, vector<16x32xf32>, vector<16x32xf32>, vector<16x32xf32> -> vector<64x32xf32>
    %9 = tpu.concatenate %6, %6, %6, %6 in 0 : vector<16x32xf32>, vector<16x32xf32>, vector<16x32xf32>, vector<16x32xf32> -> vector<64x32xf32>
    %cst = arith.constant dense<0.000000e+00> : vector<64x32xf32>
    %10 = tpu.matmul %0, %2, %cst {dimension_numbers = #tpu.dot_dimension_numbers<[1], [0], [0], [1], [0, 0, 1, 1], [], []>} : vector<64x96xbf16>, vector<96x32xbf16>, vector<64x32xf32> -> vector<64x32xf32>
    %11 = arith.addf %8, %10 : vector<64x32xf32>
    %cst_8 = arith.constant 0.000000e+00 : f32
    %12 = vector.broadcast %cst_8 : f32 to vector<64x32xf32>
    %13 = arith.maximumf %11, %12 : vector<64x32xf32>
    %cst_9 = arith.constant dense<0.000000e+00> : vector<64x32xf32>
    %14 = tpu.matmul %13, %3, %cst_9 {dimension_numbers = #tpu.dot_dimension_numbers<[1], [0], [0], [1], [0, 0, 1, 1], [], []>} : vector<64x32xf32>, vector<32x32xf32>, vector<64x32xf32> -> vector<64x32xf32>
    %15 = arith.addf %9, %14 : vector<64x32xf32>
    %16 = arith.mulf %15, %15 : vector<64x32xf32>
    %cst_10 = arith.constant dense<0.000000e+00> : vector<64xf32>
    %17 = vector.multi_reduction <add>, %16, %cst_10 [1] : vector<64x32xf32> to vector<64xf32>
    %18 = vector.shape_cast %17 : vector<64xf32> to vector<64x1xf32>
    %cst_11 = arith.constant 1.000000e-24 : f32
    %19 = vector.broadcast %cst_11 : f32 to vector<64x1xf32>
    %20 = arith.maximumf %18, %19 : vector<64x1xf32>
    %21 = math.rsqrt %20 : vector<64x1xf32>
    %22 = vector.broadcast %21 : vector<64x1xf32> to vector<64x32xf32>
    %23 = arith.mulf %15, %22 : vector<64x32xf32>
    %24 = math.tanh %23 : vector<64x32xf32>
    %cst_12 = arith.constant dense<0.000000e+00> : vector<64x32xf32>
    %25 = tpu.matmul %24, %4, %cst_12 {dimension_numbers = #tpu.dot_dimension_numbers<[1], [0], [0], [1], [0, 0, 1, 1], [], []>} : vector<64x32xf32>, vector<32x32xf32>, vector<64x32xf32> -> vector<64x32xf32>
    %26 = vector.broadcast %7 : vector<1x32xf32> to vector<64x32xf32>
    %27 = arith.addf %25, %26 : vector<64x32xf32>
    %c0_13 = arith.constant 0 : index
    %c0_14 = arith.constant 0 : index
    %28 = vector.load %arg2[%c0_13, %c0_14] : memref<64x32xf32, #tpu.memory_space<vmem>>, vector<64x32xf32>
    tpu.vector_store %arg2[%c0_13, %c0_14], %27 {strides = array<i32>} : memref<64x32xf32, #tpu.memory_space<vmem>>, vector<64x32xf32>,
    return
  }
}

</mosaic_0001>

<llo_original>
// kernel: tpu_custom_call.1
$region0: #{tpu_custom_call.1}
  #allocation0 [shape = 'u32[]', space=smem, size = 0x4, offset = 0x4, fixed_abs, tag = 'smem constant byte address 0x4 - core index']
  #allocation1 [shape = 'u32[144,128]{1,0:T(1,128)}', space=vmem, size = 0x12000, scoped, tag = 'internal scratch']
  %s0 = inlined_call_operand.vmem [shape: bf16[64,96], index: 0, kind: input, shape index: {}]
  %s1 = inlined_call_operand.vmem [shape: f32[193,32], index: 1, kind: input, shape index: {}]
  %s2 = inlined_call_operand.vmem [shape: f32[64,32], index: 2, kind: output, shape index: {}]
  %s3 = sld [smem:[#allocation0]]
  $region18: #{tpu_custom_call.1} parent=0
    _
  %s5 = ssub.s32 1, %s3
  %s6 = scalar_select 0, %s5, %s3
  // Predicated region
  $region2: #{tpu_custom_call.1} parent=0 // pred_check
    _
  $region3: #{tpu_custom_call.1} parent=0 // pred_check_branch
    %8 = sbr.rel (0) target = $region5
  $region4: #{tpu_custom_call.1} parent=0 // pred_region
    _
  $region5: #{tpu_custom_call.1} parent=0 // pred_fallthru
    _
  // Predicated region
  $region6: #{tpu_custom_call.1} parent=0 // pred_check
    _
  $region7: #{tpu_custom_call.1} parent=0 // pred_check_branch
    %10 = sbr.rel (0) target = $region9
  $region8: #{tpu_custom_call.1} parent=0 // pred_region
    _
  $region9: #{tpu_custom_call.1} parent=0 // pred_fallthru
    _
  %v12 = vld [vmem:[%s0] sm:$0xf]
  %v13 = vld [vmem:[%s0 + $0x4] sm:$0xf]
  %v14 = vld [vmem:[%s0 + $0x8] sm:$0xf]
  %v15 = vld [vmem:[%s0 + $0xc] sm:$0xf]
  %v16 = vld [vmem:[%s0 + $0x10] sm:$0xf]
  %v17 = vld [vmem:[%s0 + $0x14] sm:$0xf]
  %v18 = vld [vmem:[%s0 + $0x18] sm:$0xf]
  %v19 = vld [vmem:[%s0 + $0x1c] sm:$0xf]
  %v20 = vld [vmem:[%s1] sm:$0xff]
  %v21 = vld [vmem:[%s1 + $0x8] sm:$0xff]
  %v22 = vld [vmem:[%s1 + $0x10] sm:$0xff]
  %v23 = vld [vmem:[%s1 + $0x18] sm:$0xff]
  %v24 = vld [vmem:[%s1 + $0x20] sm:$0xff]
  %v25 = vld [vmem:[%s1 + $0x28] sm:$0xff]
  %v26 = vld [vmem:[%s1 + $0x30] sm:$0xff]
  %v27 = vld [vmem:[%s1 + $0x38] sm:$0xff]
  %v28 = vld [vmem:[%s1 + $0x40] sm:$0xff]
  %v29 = vld [vmem:[%s1 + $0x48] sm:$0xff]
  %v30 = vld [vmem:[%s1 + $0x50] sm:$0xff]
  %v31 = vld [vmem:[%s1 + $0x58] sm:$0xff]
  %v32 = vpack.c.bf16 %v21, %v20
  %v33 = vpack.c.bf16 %v23, %v22
  %v34 = vpack.c.bf16 %v25, %v24
  %v35 = vpack.c.bf16 %v27, %v26
  %v36 = vpack.c.bf16 %v29, %v28
  %v37 = vpack.c.bf16 %v31, %v30
  %v38 = vld [vmem:[%s1 + $0x60] sm:$0xff]
  %v39 = vld [vmem:[%s1 + $0x68] sm:$0xff]
  %v40 = vld [vmem:[%s1 + $0x70] sm:$0xff]
  %v41 = vld [vmem:[%s1 + $0x78] sm:$0xff]
  %v42 = vld [vmem:[%s1 + $0x80] sm:$0xff]
  %v43 = vld [vmem:[%s1 + $0x88] sm:$0xff]
  %v44 = vld [vmem:[%s1 + $0x90] sm:$0xff]
  %v45 = vld [vmem:[%s1 + $0x98] sm:$0xff]
  %v46 = vld [vmem:[%s1 + $0xa0] sm:$0xff]
  %v47 = vld [vmem:[%s1 + $0xa8] sm:$0xff]
  %v48 = vld [vmem:[%s1 + $0xb0] sm:$0xff]
  %v49 = vld [vmem:[%s1 + $0xb8] sm:$0xff]
  %v50 = vld [vmem:[%s1 + $0xc0] sm:$0x1]
  %v59 = vunpack.c.l.b16 %v12
  %v60 = vunpack.c.l.b16 %v13
  %v61 = vunpack.c.l.b16 %v14
  %v62 = vunpack.c.l.b16 %v15
  %v63 = vunpack.c.l.b16 %v16
  %v64 = vunpack.c.l.b16 %v17
  %v65 = vunpack.c.l.b16 %v18
  %v66 = vunpack.c.l.b16 %v19
  %v67 = vpack.c.b16 %v60, %v59
  %v68 = vpack.c.b16 %v62, %v61
  %v69 = vpack.c.b16 %v64, %v63
  %v70 = vpack.c.b16 %v66, %v65
  %vm71 = vcmask 785408
  %v73 = vsel %vm71, %v67, 0
  %v76 = vsel %vm71, %v68, 0
  %v79 = vsel %vm71, %v69, 0
  %v82 = vsel %vm71, %v70, 0
  %84 = vmatprep.subr.bf16.mxu0 0
  %85 = vmatpush1.bf16.msra.mxu0 %v32
  %86 = vmatprep.subr.bf16.mxu0 0
  %87 = vmatpush1.bf16.msra.mxu0 %v33
  %88 = vmatprep.subr.bf16.mxu0 0
  %89 = vmatpush1.bf16.msra.mxu0 %v34
  %90 = vmatprep.subr.bf16.mxu0 0
  %91 = vmatpush1.bf16.msra.mxu0 %v35
  %92 = vmatprep.subr.bf16.mxu0 0
  %93 = vmatpush1.bf16.msra.mxu0 %v36
  %94 = vmatprep.subr.bf16.mxu0 0
  %95 = vmatpush1.bf16.msra.mxu0 %v37
  %96 = vmatprep.subr.bf16.mxu0 0
  %97 = vmatpush1.bf16.msra.mxu0 0
  %98 = vmatprep.subr.bf16.mxu0 0
  %99 = vmatpush1.bf16.msra.mxu0 0
  %100 = vmatprep.subr.bf16.mxu0 0
  %101 = vmatpush1.bf16.msra.mxu0 0
  %102 = vmatprep.subr.bf16.mxu0 0
  %103 = vmatpush1.bf16.msra.mxu0 0
  %104 = vmatprep.subr.bf16.mxu0 0
  %105 = vmatpush1.bf16.msra.mxu0 0
  %106 = vmatprep.subr.bf16.mxu0 0
  %107 = vmatpush1.bf16.msra.mxu0 0
  %108 = vmatprep.subr.bf16.mxu0 0
  %109 = vmatpush1.bf16.msra.mxu0 0
  %110 = vmatprep.subr.bf16.mxu0 0
  %111 = vmatpush1.bf16.msra.mxu0 0
  %112 = vmatprep.subr.bf16.mxu0 0
  %113 = vmatpush1.bf16.msra.mxu0 0
  %114 = vmatprep.subr.bf16.mxu0 0
  %115 = vmatpush1.bf16.msra.mxu0 0
  %116 = vmatprep.mubr.bf16.mxu0 0
  %117 = vmatmul.mubr.bf16.gmra.mrb[0].mxu0 %v73
  %v118 = vpop.f32.mrb[0].mxu0
  %v119 = vadd.f32 0.0, %v118
  %v120 = vpop.f32.mrb[0].mxu0
  %v121 = vpop.f32.mrb[0].mxu0
  %v122 = vadd.f32 0.0, %v121
  %v123 = vpop.f32.mrb[0].mxu0
  %124 = vmatprep.mubr.bf16.mxu0 0
  %125 = vmatmul.mubr.bf16.gmra.mrb[0].mxu0 %v76
  %v126 = vpop.f32.mrb[0].mxu0
  %v127 = vadd.f32 0.0, %v126
  %v128 = vpop.f32.mrb[0].mxu0
  %v129 = vpop.f32.mrb[0].mxu0
  %v130 = vadd.f32 0.0, %v129
  %v131 = vpop.f32.mrb[0].mxu0
  %132 = vmatprep.mubr.bf16.mxu0 0
  %133 = vmatmul.mubr.bf16.gmra.mrb[0].mxu0 %v79
  %v134 = vpop.f32.mrb[0].mxu0
  %v135 = vadd.f32 0.0, %v134
  %v136 = vpop.f32.mrb[0].mxu0
  %v137 = vpop.f32.mrb[0].mxu0
  %v138 = vadd.f32 0.0, %v137
  %v139 = vpop.f32.mrb[0].mxu0
  %140 = vmatprep.mubr.bf16.mxu0 0
  %141 = vmatmul.mubr.bf16.gmra.mrb[0].mxu0 %v82
  %v142 = vpop.f32.mrb[0].mxu0
  %v143 = vadd.f32 0.0, %v142
  %v144 = vpop.f32.mrb[0].mxu0
  %v145 = vpop.f32.mrb[0].mxu0
  %v146 = vadd.f32 0.0, %v145
  %v147 = vpop.f32.mrb[0].mxu0
  %148 = vdwg.mxu0
  %v149 = vadd.f32 %v46, %v119
  %v150 = vadd.f32 %v47, %v122
  %v151 = vadd.f32 %v46, %v127
  %v152 = vadd.f32 %v47, %v130
  %v153 = vadd.f32 %v46, %v135
  %v154 = vadd.f32 %v47, %v138
  %v155 = vadd.f32 %v46, %v143
  %v156 = vadd.f32 %v47, %v146
  %v157 = vmax.f32 %v149, 0.0
  %v158 = vmax.f32 %v150, 0.0
  %v159 = vmax.f32 %v151, 0.0
  %v160 = vmax.f32 %v152, 0.0
  %v161 = vmax.f32 %v153, 0.0
  %v162 = vmax.f32 %v154, 0.0
  %v163 = vmax.f32 %v155, 0.0
  %v164 = vmax.f32 %v156, 0.0
  %vm165 = vcmask 261120
  %v167 = vsel %vm165, %v157, 0
  %v170 = vsel %vm165, %v158, 0
  %v173 = vsel %vm165, %v159, 0
  %v176 = vsel %vm165, %v160, 0
  %v179 = vsel %vm165, %v161, 0
  %v182 = vsel %vm165, %v162, 0
  %v185 = vsel %vm165, %v163, 0
  %v188 = vsel %vm165, %v164, 0
  %190 = vmatprep.subr.mxu0 0.0
  %191 = vmatpush1.msra.mxu0 %v38
  %192 = vmatprep.subr.mxu0 0.0
  %193 = vmatpush1.msra.mxu0 %v39
  %194 = vmatprep.subr.mxu0 0.0
  %195 = vmatpush1.msra.mxu0 %v40
  %196 = vmatprep.subr.mxu0 0.0
  %197 = vmatpush1.msra.mxu0 %v41
  %198 = vmatprep.subr.mxu0 0.0
  %199 = vmatpush1.msra.mxu0 0.0
  %200 = vmatprep.subr.mxu0 0.0
  %201 = vmatpush1.msra.mxu0 0.0
  %202 = vmatprep.subr.mxu0 0.0
  %203 = vmatpush1.msra.mxu0 0.0
  %204 = vmatprep.subr.mxu0 0.0
  %205 = vmatpush1.msra.mxu0 0.0
  %206 = vmatprep.subr.mxu0 0.0
  %207 = vmatpush1.msra.mxu0 0.0
  %208 = vmatprep.subr.mxu0 0.0
  %209 = vmatpush1.msra.mxu0 0.0
  %210 = vmatprep.subr.mxu0 0.0
  %211 = vmatpush1.msra.mxu0 0.0
  %212 = vmatprep.subr.mxu0 0.0
  %213 = vmatpush1.msra.mxu0 0.0
  %214 = vmatprep.subr.mxu0 0.0
  %215 = vmatpush1.msra.mxu0 0.0
  %216 = vmatprep.subr.mxu0 0.0
  %217 = vmatpush1.msra.mxu0 0.0
  %218 = vmatprep.subr.mxu0 0.0
  %219 = vmatpush1.msra.mxu0 0.0
  %220 = vmatprep.subr.mxu0 0.0
  %221 = vmatpush1.msra.mxu0 0.0
  %222 = vmatprep.subr.mxu0 0.0
  %223 = vmatpush1.msra.mxu0 0.0
  %224 = vmatprep.subr.mxu0 0.0
  %225 = vmatpush1.msra.mxu0 0.0
  %226 = vmatprep.subr.mxu0 0.0
  %227 = vmatpush1.msra.mxu0 0.0
  %228 = vmatprep.subr.mxu0 0.0
  %229 = vmatpush1.msra.mxu0 0.0
  %230 = vmatprep.subr.mxu0 0.0
  %231 = vmatpush1.msra.mxu0 0.0
  %232 = vmatprep.subr.mxu0 0.0
  %233 = vmatpush1.msra.mxu0 0.0
  %234 = vmatprep.subr.mxu0 0.0
  %235 = vmatpush1.msra.mxu0 0.0
  %236 = vmatprep.subr.mxu0 0.0
  %237 = vmatpush1.msra.mxu0 0.0
  %238 = vmatprep.subr.mxu0 0.0
  %239 = vmatpush1.msra.mxu0 0.0
  %240 = vmatprep.subr.mxu0 0.0
  %241 = vmatpush1.msra.mxu0 0.0
  %242 = vmatprep.subr.mxu0 0.0
  %243 = vmatpush1.msra.mxu0 0.0
  %244 = vmatprep.subr.mxu0 0.0
  %245 = vmatpush1.msra.mxu0 0.0
  %246 = vmatprep.subr.mxu0 0.0
  %247 = vmatpush1.msra.mxu0 0.0
  %248 = vmatprep.subr.mxu0 0.0
  %249 = vmatpush1.msra.mxu0 0.0
  %250 = vmatprep.subr.mxu0 0.0
  %251 = vmatpush1.msra.mxu0 0.0
  %252 = vmatprep.subr.mxu0 0.0
  %253 = vmatpush1.msra.mxu0 0.0
  %254 = vmatprep.mubr.f32.mxu0 0.0
  %255 = vmatmul.mubr.f32.gmra.mrb[0].mxu0 %v167
  %v256 = vpop.f32.mrb[0].mxu0
  %v257 = vadd.f32 0.0, %v256
  %v258 = vpop.f32.mrb[0].mxu0
  %259 = vmatprep.mubr.f32.mxu0 0.0
  %260 = vmatmul.mubr.f32.gmra.mrb[0].mxu0 %v170
  %v261 = vpop.f32.mrb[0].mxu0
  %v262 = vadd.f32 0.0, %v261
  %v263 = vpop.f32.mrb[0].mxu0
  %264 = vmatprep.mubr.f32.mxu0 0.0
  %265 = vmatmul.mubr.f32.gmra.mrb[0].mxu0 %v173
  %v266 = vpop.f32.mrb[0].mxu0
  %v267 = vadd.f32 0.0, %v266
  %v268 = vpop.f32.mrb[0].mxu0
  %269 = vmatprep.mubr.f32.mxu0 0.0
  %270 = vmatmul.mubr.f32.gmra.mrb[0].mxu0 %v176
  %v271 = vpop.f32.mrb[0].mxu0
  %v272 = vadd.f32 0.0, %v271
  %v273 = vpop.f32.mrb[0].mxu0
  %274 = vmatprep.mubr.f32.mxu0 0.0
  %275 = vmatmul.mubr.f32.gmra.mrb[0].mxu0 %v179
  %v276 = vpop.f32.mrb[0].mxu0
  %v277 = vadd.f32 0.0, %v276
  %v278 = vpop.f32.mrb[0].mxu0
  %279 = vmatprep.mubr.f32.mxu0 0.0
  %280 = vmatmul.mubr.f32.gmra.mrb[0].mxu0 %v182
  %v281 = vpop.f32.mrb[0].mxu0
  %v282 = vadd.f32 0.0, %v281
  %v283 = vpop.f32.mrb[0].mxu0
  %284 = vmatprep.mubr.f32.mxu0 0.0
  %285 = vmatmul.mubr.f32.gmra.mrb[0].mxu0 %v185
  %v286 = vpop.f32.mrb[0].mxu0
  %v287 = vadd.f32 0.0, %v286
  %v288 = vpop.f32.mrb[0].mxu0
  %289 = vmatprep.mubr.f32.mxu0 0.0
  %290 = vmatmul.mubr.f32.gmra.mrb[0].mxu0 %v188
  %v291 = vpop.f32.mrb[0].mxu0
  %v292 = vadd.f32 0.0, %v291
  %v293 = vpop.f32.mrb[0].mxu0
  %294 = vdwg.mxu0
  %v295 = vadd.f32 %v48, %v257
  %v296 = vadd.f32 %v49, %v262
  %v297 = vadd.f32 %v48, %v267
  %v298 = vadd.f32 %v49, %v272
  %v299 = vadd.f32 %v48, %v277
  %v300 = vadd.f32 %v49, %v282
  %v301 = vadd.f32 %v48, %v287
  %v302 = vadd.f32 %v49, %v292
  %v303 = vmul.f32 %v295, %v295
  %v304 = vmul.f32 %v296, %v296
  %v305 = vmul.f32 %v297, %v297
  %v306 = vmul.f32 %v298, %v298
  %v307 = vmul.f32 %v299, %v299
  %v308 = vmul.f32 %v300, %v300
  %v309 = vmul.f32 %v301, %v301
  %v310 = vmul.f32 %v302, %v302
  %v311 = vsel %vm165, %v303, 0.0
  %312 = vadd.xlane.f32.xlu0 %v311
  %v313 = vpop.xlane.xlu0 %312
  %v314 = vsel %vm165, %v304, 0.0
  %315 = vadd.xlane.f32.xlu0 %v314
  %v316 = vpop.xlane.xlu0 %315
  %v317 = vsel %vm165, %v305, 0.0
  %318 = vadd.xlane.f32.xlu0 %v317
  %v319 = vpop.xlane.xlu0 %318
  %v320 = vsel %vm165, %v306, 0.0
  %321 = vadd.xlane.f32.xlu0 %v320
  %v322 = vpop.xlane.xlu0 %321
  %v323 = vsel %vm165, %v307, 0.0
  %324 = vadd.xlane.f32.xlu0 %v323
  %v325 = vpop.xlane.xlu0 %324
  %v326 = vsel %vm165, %v308, 0.0
  %327 = vadd.xlane.f32.xlu0 %v326
  %v328 = vpop.xlane.xlu0 %327
  %v329 = vsel %vm165, %v309, 0.0
  %330 = vadd.xlane.f32.xlu0 %v329
  %v331 = vpop.xlane.xlu0 %330
  %v332 = vsel %vm165, %v310, 0.0
  %333 = vadd.xlane.f32.xlu0 %v332
  %v334 = vpop.xlane.xlu0 %333
  %v335 = vmax.f32 %v313, 1e-24
  %v336 = vmax.f32 %v316, 1e-24
  %v337 = vmax.f32 %v319, 1e-24
  %v338 = vmax.f32 %v322, 1e-24
  %v339 = vmax.f32 %v325, 1e-24
  %v340 = vmax.f32 %v328, 1e-24
  %v341 = vmax.f32 %v331, 1e-24
  %v342 = vmax.f32 %v334, 1e-24
  %v343 = vrsqrt.pop %v335
  %v344 = vrsqrt.pop %v336
  %v345 = vrsqrt.pop %v337
  %v346 = vrsqrt.pop %v338
  %v347 = vrsqrt.pop %v339
  %v348 = vrsqrt.pop %v340
  %v349 = vrsqrt.pop %v341
  %v350 = vrsqrt.pop %v342
  %v351 = vmul.f32 %v295, %v343
  %v352 = vmul.f32 %v296, %v344
  %v353 = vmul.f32 %v297, %v345
  %v354 = vmul.f32 %v298, %v346
  %v355 = vmul.f32 %v299, %v347
  %v356 = vmul.f32 %v300, %v348
  %v357 = vmul.f32 %v301, %v349
  %v358 = vmul.f32 %v302, %v350
  %v359 = vtanh.pop %v351
  %v360 = vtanh.pop %v352
  %v361 = vtanh.pop %v353
  %v362 = vtanh.pop %v354
  %v363 = vtanh.pop %v355
  %v364 = vtanh.pop %v356
  %v365 = vtanh.pop %v357
  %v366 = vtanh.pop %v358
  %v367 = vlaneseq
  %v368 = vshrl.u32 %v367, 7
  %v369 = vsub.s32 0, %v368
  %v370 = vrot.slane %v50, %v369
  %v372 = vsel %vm165, %v359, 0
  %v375 = vsel %vm165, %v360, 0
  %v378 = vsel %vm165, %v361, 0
  %v381 = vsel %vm165, %v362, 0
  %v384 = vsel %vm165, %v363, 0
  %v387 = vsel %vm165, %v364, 0
  %v390 = vsel %vm165, %v365, 0
  %v393 = vsel %vm165, %v366, 0
  %395 = vmatprep.subr.mxu0 0.0
  %396 = vmatpush1.msra.mxu0 %v42
  %397 = vmatprep.subr.mxu0 0.0
  %398 = vmatpush1.msra.mxu0 %v43
  %399 = vmatprep.subr.mxu0 0.0
  %400 = vmatpush1.msra.mxu0 %v44
  %401 = vmatprep.subr.mxu0 0.0
  %402 = vmatpush1.msra.mxu0 %v45
  %403 = vmatprep.subr.mxu0 0.0
  %404 = vmatpush1.msra.mxu0 0.0
  %405 = vmatprep.subr.mxu0 0.0
  %406 = vmatpush1.msra.mxu0 0.0
  %407 = vmatprep.subr.mxu0 0.0
  %408 = vmatpush1.msra.mxu0 0.0
  %409 = vmatprep.subr.mxu0 0.0
  %410 = vmatpush1.msra.mxu0 0.0
  %411 = vmatprep.subr.mxu0 0.0
  %412 = vmatpush1.msra.mxu0 0.0
  %413 = vmatprep.subr.mxu0 0.0
  %414 = vmatpush1.msra.mxu0 0.0
  %415 = vmatprep.subr.mxu0 0.0
  %416 = vmatpush1.msra.mxu0 0.0
  %417 = vmatprep.subr.mxu0 0.0
  %418 = vmatpush1.msra.mxu0 0.0
  %419 = vmatprep.subr.mxu0 0.0
  %420 = vmatpush1.msra.mxu0 0.0
  %421 = vmatprep.subr.mxu0 0.0
  %422 = vmatpush1.msra.mxu0 0.0
  %423 = vmatprep.subr.mxu0 0.0
  %424 = vmatpush1.msra.mxu0 0.0
  %425 = vmatprep.subr.mxu0 0.0
  %426 = vmatpush1.msra.mxu0 0.0
  %427 = vmatprep.subr.mxu0 0.0
  %428 = vmatpush1.msra.mxu0 0.0
  %429 = vmatprep.subr.mxu0 0.0
  %430 = vmatpush1.msra.mxu0 0.0
  %431 = vmatprep.subr.mxu0 0.0
  %432 = vmatpush1.msra.mxu0 0.0
  %433 = vmatprep.subr.mxu0 0.0
  %434 = vmatpush1.msra.mxu0 0.0
  %435 = vmatprep.subr.mxu0 0.0
  %436 = vmatpush1.msra.mxu0 0.0
  %437 = vmatprep.subr.mxu0 0.0
  %438 = vmatpush1.msra.mxu0 0.0
  %439 = vmatprep.subr.mxu0 0.0
  %440 = vmatpush1.msra.mxu0 0.0
  %441 = vmatprep.subr.mxu0 0.0
  %442 = vmatpush1.msra.mxu0 0.0
  %443 = vmatprep.subr.mxu0 0.0
  %444 = vmatpush1.msra.mxu0 0.0
  %445 = vmatprep.subr.mxu0 0.0
  %446 = vmatpush1.msra.mxu0 0.0
  %447 = vmatprep.subr.mxu0 0.0
  %448 = vmatpush1.msra.mxu0 0.0
  %449 = vmatprep.subr.mxu0 0.0
  %450 = vmatpush1.msra.mxu0 0.0
  %451 = vmatprep.subr.mxu0 0.0
  %452 = vmatpush1.msra.mxu0 0.0
  %453 = vmatprep.subr.mxu0 0.0
  %454 = vmatpush1.msra.mxu0 0.0
  %455 = vmatprep.subr.mxu0 0.0
  %456 = vmatpush1.msra.mxu0 0.0
  %457 = vmatprep.subr.mxu0 0.0
  %458 = vmatpush1.msra.mxu0 0.0
  %459 = vmatprep.mubr.f32.mxu0 0.0
  %460 = vmatmul.mubr.f32.gmra.mrb[0].mxu0 %v372
  %v461 = vpop.f32.mrb[0].mxu0
  %v462 = vadd.f32 %v370, %v461
  %v463 = vpop.f32.mrb[0].mxu0
  %464 = vmatprep.mubr.f32.mxu0 0.0
  %465 = vmatmul.mubr.f32.gmra.mrb[0].mxu0 %v375
  %v466 = vpop.f32.mrb[0].mxu0
  %v467 = vadd.f32 %v370, %v466
  %v468 = vpop.f32.mrb[0].mxu0
  %469 = vmatprep.mubr.f32.mxu0 0.0
  %470 = vmatmul.mubr.f32.gmra.mrb[0].mxu0 %v378
  %v471 = vpop.f32.mrb[0].mxu0
  %v472 = vadd.f32 %v370, %v471
  %v473 = vpop.f32.mrb[0].mxu0
  %474 = vmatprep.mubr.f32.mxu0 0.0
  %475 = vmatmul.mubr.f32.gmra.mrb[0].mxu0 %v381
  %v476 = vpop.f32.mrb[0].mxu0
  %v477 = vadd.f32 %v370, %v476
  %v478 = vpop.f32.mrb[0].mxu0
  %479 = vmatprep.mubr.f32.mxu0 0.0
  %480 = vmatmul.mubr.f32.gmra.mrb[0].mxu0 %v384
  %v481 = vpop.f32.mrb[0].mxu0
  %v482 = vadd.f32 %v370, %v481
  %v483 = vpop.f32.mrb[0].mxu0
  %484 = vmatprep.mubr.f32.mxu0 0.0
  %485 = vmatmul.mubr.f32.gmra.mrb[0].mxu0 %v387
  %v486 = vpop.f32.mrb[0].mxu0
  %v487 = vadd.f32 %v370, %v486
  %v488 = vpop.f32.mrb[0].mxu0
  %489 = vmatprep.mubr.f32.mxu0 0.0
  %490 = vmatmul.mubr.f32.gmra.mrb[0].mxu0 %v390
  %v491 = vpop.f32.mrb[0].mxu0
  %v492 = vadd.f32 %v370, %v491
  %v493 = vpop.f32.mrb[0].mxu0
  %494 = vmatprep.mubr.f32.mxu0 0.0
  %495 = vmatmul.mubr.f32.gmra.mrb[0].mxu0 %v393
  %v496 = vpop.f32.mrb[0].mxu0
  %v497 = vadd.f32 %v370, %v496
  %v498 = vpop.f32.mrb[0].mxu0
  %499 = vdwg.mxu0
  %500 = vst.msk [vmem:[%s2] sm:$0xff] %vm165, %v462
  %501 = vst.msk [vmem:[%s2 + $0x8] sm:$0xff] %vm165, %v467
  %502 = vst.msk [vmem:[%s2 + $0x10] sm:$0xff] %vm165, %v472
  %503 = vst.msk [vmem:[%s2 + $0x18] sm:$0xff] %vm165, %v477
  %504 = vst.msk [vmem:[%s2 + $0x20] sm:$0xff] %vm165, %v482
  %505 = vst.msk [vmem:[%s2 + $0x28] sm:$0xff] %vm165, %v487
  %506 = vst.msk [vmem:[%s2 + $0x30] sm:$0xff] %vm165, %v492
  %507 = vst.msk [vmem:[%s2 + $0x38] sm:$0xff] %vm165, %v497
  // Predicated region
  $region10: #{tpu_custom_call.1} parent=0 // pred_check
    _
  $region11: #{tpu_custom_call.1} parent=0 // pred_check_branch
    %509 = sbr.rel (0) target = $region13
  $region12: #{tpu_custom_call.1} parent=0 // pred_region
    _
  $region13: #{tpu_custom_call.1} parent=0 // pred_fallthru
    _
  // Predicated region
  $region14: #{tpu_custom_call.1} parent=0 // pred_check
    _
  $region15: #{tpu_custom_call.1} parent=0 // pred_check_branch
    %511 = sbr.rel (0) target = $region17
  $region16: #{tpu_custom_call.1} parent=0 // pred_region
    _
  $region17: #{tpu_custom_call.1} parent=0 // pred_fallthru
    _

</llo_original>
